<compile_context>
chip_gen: v7x
topology: tpu7x:2x2x1
jax: 0.10.0
libtpu: 0.0.40
codegen_flags: <defaults>
</compile_context>

<pallas_src>
import functools

import jax
import jax.numpy as jnp
from jax.experimental import pallas as pl
from jax.experimental.pallas import tpu as pltpu

_LANE = 128
_MAX_SUBCHUNKS = 64          # 64 * 128 = 8192 boxes per grid step


def _compute_loss(p, loss_type):
    """p: (8, S, 128) packed coords (rows 0-3 pred, 4-7 target, cx cy w h).

    Returns per-box loss of shape (S, 128)."""
    cx1, cy1, w1, h1 = p[0], p[1], p[2], p[3]
    cx2, cy2, w2, h2 = p[4], p[5], p[6], p[7]

    # cxcywh -> x0y0x1y1
    b1_x0 = cx1 - w1 * 0.5
    b1_y0 = cy1 - h1 * 0.5
    b1_x1 = cx1 + w1 * 0.5
    b1_y1 = cy1 + h1 * 0.5
    b2_x0 = cx2 - w2 * 0.5
    b2_y0 = cy2 - h2 * 0.5
    b2_x1 = cx2 + w2 * 0.5
    b2_y1 = cy2 + h2 * 0.5

    area1 = (b1_x1 - b1_x0) * (b1_y1 - b1_y0)
    area2 = (b2_x1 - b2_x0) * (b2_y1 - b2_y0)

    lu_x = jnp.maximum(b1_x0, b2_x0)
    lu_y = jnp.maximum(b1_y0, b2_y0)
    rd_x = jnp.minimum(b1_x1, b2_x1)
    rd_y = jnp.minimum(b1_y1, b2_y1)

    inter_w = jnp.maximum(rd_x - lu_x, 0.0)  # F.relu
    inter_h = jnp.maximum(rd_y - lu_y, 0.0)
    inter_area = inter_w * inter_h

    union_area = area1 + area2 - inter_area
    iou = inter_area / (union_area + 1e-16)

    if loss_type == 'iou':
        loss = 1.0 - iou * iou
    elif loss_type == 'giou':
        enc_lu_x = jnp.minimum(b1_x0, b2_x0)
        enc_lu_y = jnp.minimum(b1_y0, b2_y0)
        enc_rd_x = jnp.maximum(b1_x1, b2_x1)
        enc_rd_y = jnp.maximum(b1_y1, b2_y1)
        enclose_area = (enc_rd_x - enc_lu_x) * (enc_rd_y - enc_lu_y)
        # epsilon keeps all-zero padded boxes from producing 0/0 NaNs;
        # negligible (<1e-16 relative) for real boxes vs. the PyTorch formula.
        giou = iou - (enclose_area - union_area) / (enclose_area + 1e-16)
        giou = jnp.clip(giou, -1.0, 1.0)
        loss = 1.0 - giou
    else:
        raise ValueError(f"unknown loss_type {loss_type}")
    return loss


def _loss_map_kernel(box_ref, out_ref, *, loss_type):
    # box_ref: (8, S, 128); out_ref: (S, 128)  -> per-box loss
    out_ref[...] = _compute_loss(box_ref[...], loss_type)


def _loss_reduce_kernel(box_ref, out_ref, *, loss_type, n_valid, s_chunks):
    # box_ref: (8, S, 128); out_ref: (1, 8, 128)  -> per-step partial sums
    loss = _compute_loss(box_ref[...], loss_type)            # (S, 128)

    # mask out padded boxes (global index >= n_valid)
    step = pl.program_id(0)
    row = jax.lax.broadcasted_iota(jnp.int32, loss.shape, 0)
    lane = jax.lax.broadcasted_iota(jnp.int32, loss.shape, 1)
    idx = (step * s_chunks + row) * _LANE + lane
    loss = jnp.where(idx < n_valid, loss, 0.0)

    # fold the S//8 sublane tiles together: pure vreg-wise adds (VALU only)
    partial = loss.reshape(s_chunks // 8, 8, _LANE).sum(axis=0)  # (8, 128)
    out_ref[0] = partial


def _pick_tile(n_chunks):
    """Pick S (sublane-chunks of 128 boxes per grid step), multiple of 8."""
    c8 = max(8, ((n_chunks + 7) // 8) * 8)
    if c8 <= 8:
        return 8
    if c8 <= 2 * _MAX_SUBCHUNKS:
        # aim for >=2 grid steps so both v7x TensorCores get work
        half = (c8 + 1) // 2
        return ((half + 7) // 8) * 8
    return _MAX_SUBCHUNKS


def my_iou_loss(pred, target, reduction='none', loss_type='iou'):
    """pred, target: (N, 4) float arrays of [cx, cy, w, h]."""
    assert pred.shape[0] == target.shape[0]
    assert pred.shape[1] == 4 and target.shape[1] == 4
    n = pred.shape[0]

    n_chunks = -(-n // _LANE)               # ceil(N / 128)
    s = _pick_tile(n_chunks)
    grid_steps = -(-max(n_chunks, 1) // s)  # ceil
    nb_pad = grid_steps * s
    n_pad = nb_pad * _LANE

    # single pad (no zeros+scatter): (N,8) -> (N_pad,8) -> (8, Nb, 128)
    coords = jnp.concatenate(
        [pred.astype(jnp.float32), target.astype(jnp.float32)], axis=1)
    coords = jnp.pad(coords, ((0, n_pad - n), (0, 0)))
    packed = coords.T.reshape(8, nb_pad, _LANE)

    in_spec = pl.BlockSpec((8, s, _LANE), lambda i: (0, i, 0))
    cost = pl.CostEstimate(flops=32 * n_pad, transcendentals=0,
                           bytes_accessed=(8 * 4 + 4) * n_pad)

    if reduction in ('sum', 'mean'):
        kernel = functools.partial(_loss_reduce_kernel, loss_type=loss_type,
                                   n_valid=n, s_chunks=s)
        out = pl.pallas_call(
            kernel,
            out_shape=jax.ShapeDtypeStruct((grid_steps, 8, _LANE), jnp.float32),
            grid_spec=pltpu.PrefetchScalarGridSpec(
                num_scalar_prefetch=0,
                grid=(grid_steps,),
                in_specs=[in_spec],
                out_specs=pl.BlockSpec((1, 8, _LANE), lambda i: (i, 0, 0)),
            ),
            compiler_params=pltpu.CompilerParams(
                dimension_semantics=("parallel",)),
            cost_estimate=cost,
        )(packed)
        total = out.sum()                    # tiny: grid_steps*8*128 floats
        if reduction == 'mean':
            return total / n
        return total

    # reduction == 'none': lane-dense (S,128) per-box loss blocks
    kernel = functools.partial(_loss_map_kernel, loss_type=loss_type)
    out = pl.pallas_call(
        kernel,
        out_shape=jax.ShapeDtypeStruct((nb_pad, _LANE), jnp.float32),
        grid_spec=pltpu.PrefetchScalarGridSpec(
            num_scalar_prefetch=0,
            grid=(grid_steps,),
            in_specs=[in_spec],
            out_specs=pl.BlockSpec((s, _LANE), lambda i: (i, 0)),
        ),
        compiler_params=pltpu.CompilerParams(
            dimension_semantics=("parallel",)),
        cost_estimate=cost,
    )(packed)
    return out.reshape(-1)[:n]               # (N,) per-box loss


def _reference(pred, target, reduction='none', loss_type='iou'):
    # plain-JAX reference for sanity checking (mirrors the PyTorch module)
    b1 = jnp.concatenate([pred[:, :2] - pred[:, 2:] * 0.5,
                          pred[:, :2] + pred[:, 2:] * 0.5], axis=-1)
    b2 = jnp.concatenate([target[:, :2] - target[:, 2:] * 0.5,
                          target[:, :2] + target[:, 2:] * 0.5], axis=-1)
    a1 = (b1[:, 2] - b1[:, 0]) * (b1[:, 3] - b1[:, 1])
    a2 = (b2[:, 2] - b2[:, 0]) * (b2[:, 3] - b2[:, 1])
    lu = jnp.maximum(b1[:, :2], b2[:, :2])
    rd = jnp.minimum(b1[:, 2:], b2[:, 2:])
    inter = jnp.maximum(rd - lu, 0.0)
    inter_area = inter[:, 0] * inter[:, 1]
    union = a1 + a2 - inter_area
    iou = inter_area / (union + 1e-16)
    if loss_type == 'iou':
        loss = 1.0 - iou ** 2
    else:
        elu = jnp.minimum(b1[:, :2], b2[:, :2])
        erd = jnp.maximum(b1[:, 2:], b2[:, 2:])
        ewh = erd - elu
        earea = ewh[:, 0] * ewh[:, 1]
        giou = jnp.clip(iou - (earea - union) / earea, -1.0, 1.0)
        loss = 1.0 - giou
    if reduction == 'mean':
        loss = loss.mean()
    elif reduction == 'sum':
        loss = loss.sum()
    return loss


def _make_boxes(key, n):
    k1, k2 = jax.random.split(key)
    centers = jax.random.uniform(k1, (n, 2), jnp.float32, 0.0, 10.0)
    sizes = jax.random.uniform(k2, (n, 2), jnp.float32, 1.0, 5.0)
    return jnp.concatenate([centers, sizes], axis=-1)


if __name__ == "__main__":
    key = jax.random.PRNGKey(0)

    ok = True
    # N=8: single grid step.  N=1500: two grid steps + masked in-kernel sum.
    for n_boxes in (8, 1500):
        key, ka, kb = jax.random.split(key, 3)
        pred = _make_boxes(ka, n_boxes)
        target = _make_boxes(kb, n_boxes)

        for loss_type in ('iou', 'giou'):
            for reduction in ('none', 'mean', 'sum'):
                out = my_iou_loss(pred, target, reduction=reduction,
                                  loss_type=loss_type)
                jax.block_until_ready(out)
                ref = _reference(pred, target, reduction=reduction,
                                 loss_type=loss_type)
                tol = 1e-4 if reduction == 'sum' else 1e-5
                if not jnp.allclose(out, ref, atol=tol, rtol=1e-5):
                    ok = False

    if ok:
        print("KERNEL_OK")
</pallas_src>

<mosaic_0001>
module attributes {stable_mosaic.version = 11 : i64} {
  func.func @_loss_map_kernel(%arg0: i32, %arg1: memref<8x8x128xf32, #tpu.memory_space<vmem>>, %arg2: memref<8x128xf32, #tpu.memory_space<vmem>>) attributes {dimension_semantics = [#tpu.dimension_semantics<parallel>], iteration_bounds = array<i64: 1>, scalar_prefetch = 0 : i64, scratch_operands = 0 : i64, tpu.core_type = #tpu.core_type<tc>, window_params = [{transform_indices = @transform_0, window_bounds = array<i64: 8, 8, 128>}, {transform_indices = @transform_1, window_bounds = array<i64: 8, 128>}]} {
    %c0 = arith.constant 0 : index
    %c0_0 = arith.constant 0 : index
    %c0_1 = arith.constant 0 : index
    %0 = vector.load %arg1[%c0, %c0_0, %c0_1] : memref<8x8x128xf32, #tpu.memory_space<vmem>>, vector<8x8x128xf32>
    %1 = vector.extract_strided_slice %0 {offsets = [0, 0, 0], sizes = [1, 8, 128], strides = [1, 1, 1]} : vector<8x8x128xf32> to vector<1x8x128xf32>
    %2 = vector.shape_cast %1 : vector<1x8x128xf32> to vector<8x128xf32>
    %3 = vector.extract_strided_slice %0 {offsets = [1, 0, 0], sizes = [1, 8, 128], strides = [1, 1, 1]} : vector<8x8x128xf32> to vector<1x8x128xf32>
    %4 = vector.shape_cast %3 : vector<1x8x128xf32> to vector<8x128xf32>
    %5 = vector.extract_strided_slice %0 {offsets = [2, 0, 0], sizes = [1, 8, 128], strides = [1, 1, 1]} : vector<8x8x128xf32> to vector<1x8x128xf32>
    %6 = vector.shape_cast %5 : vector<1x8x128xf32> to vector<8x128xf32>
    %7 = vector.extract_strided_slice %0 {offsets = [3, 0, 0], sizes = [1, 8, 128], strides = [1, 1, 1]} : vector<8x8x128xf32> to vector<1x8x128xf32>
    %8 = vector.shape_cast %7 : vector<1x8x128xf32> to vector<8x128xf32>
    %9 = vector.extract_strided_slice %0 {offsets = [4, 0, 0], sizes = [1, 8, 128], strides = [1, 1, 1]} : vector<8x8x128xf32> to vector<1x8x128xf32>
    %10 = vector.shape_cast %9 : vector<1x8x128xf32> to vector<8x128xf32>
    %11 = vector.extract_strided_slice %0 {offsets = [5, 0, 0], sizes = [1, 8, 128], strides = [1, 1, 1]} : vector<8x8x128xf32> to vector<1x8x128xf32>
    %12 = vector.shape_cast %11 : vector<1x8x128xf32> to vector<8x128xf32>
    %13 = vector.extract_strided_slice %0 {offsets = [6, 0, 0], sizes = [1, 8, 128], strides = [1, 1, 1]} : vector<8x8x128xf32> to vector<1x8x128xf32>
    %14 = vector.shape_cast %13 : vector<1x8x128xf32> to vector<8x128xf32>
    %15 = vector.extract_strided_slice %0 {offsets = [7, 0, 0], sizes = [1, 8, 128], strides = [1, 1, 1]} : vector<8x8x128xf32> to vector<1x8x128xf32>
    %16 = vector.shape_cast %15 : vector<1x8x128xf32> to vector<8x128xf32>
    %cst = arith.constant 5.000000e-01 : f32
    %17 = vector.broadcast %cst : f32 to vector<8x128xf32>
    %18 = arith.mulf %6, %17 : vector<8x128xf32>
    %19 = arith.subf %2, %18 : vector<8x128xf32>
    %cst_2 = arith.constant 5.000000e-01 : f32
    %20 = vector.broadcast %cst_2 : f32 to vector<8x128xf32>
    %21 = arith.mulf %8, %20 : vector<8x128xf32>
    %22 = arith.subf %4, %21 : vector<8x128xf32>
    %cst_3 = arith.constant 5.000000e-01 : f32
    %23 = vector.broadcast %cst_3 : f32 to vector<8x128xf32>
    %24 = arith.mulf %6, %23 : vector<8x128xf32>
    %25 = arith.addf %2, %24 : vector<8x128xf32>
    %cst_4 = arith.constant 5.000000e-01 : f32
    %26 = vector.broadcast %cst_4 : f32 to vector<8x128xf32>
    %27 = arith.mulf %8, %26 : vector<8x128xf32>
    %28 = arith.addf %4, %27 : vector<8x128xf32>
    %cst_5 = arith.constant 5.000000e-01 : f32
    %29 = vector.broadcast %cst_5 : f32 to vector<8x128xf32>
    %30 = arith.mulf %14, %29 : vector<8x128xf32>
    %31 = arith.subf %10, %30 : vector<8x128xf32>
    %cst_6 = arith.constant 5.000000e-01 : f32
    %32 = vector.broadcast %cst_6 : f32 to vector<8x128xf32>
    %33 = arith.mulf %16, %32 : vector<8x128xf32>
    %34 = arith.subf %12, %33 : vector<8x128xf32>
    %cst_7 = arith.constant 5.000000e-01 : f32
    %35 = vector.broadcast %cst_7 : f32 to vector<8x128xf32>
    %36 = arith.mulf %14, %35 : vector<8x128xf32>
    %37 = arith.addf %10, %36 : vector<8x128xf32>
    %cst_8 = arith.constant 5.000000e-01 : f32
    %38 = vector.broadcast %cst_8 : f32 to vector<8x128xf32>
    %39 = arith.mulf %16, %38 : vector<8x128xf32>
    %40 = arith.addf %12, %39 : vector<8x128xf32>
    %41 = arith.subf %25, %19 : vector<8x128xf32>
    %42 = arith.subf %28, %22 : vector<8x128xf32>
    %43 = arith.mulf %41, %42 : vector<8x128xf32>
    %44 = arith.subf %37, %31 : vector<8x128xf32>
    %45 = arith.subf %40, %34 : vector<8x128xf32>
    %46 = arith.mulf %44, %45 : vector<8x128xf32>
    %47 = arith.maximumf %19, %31 : vector<8x128xf32>
    %48 = arith.maximumf %22, %34 : vector<8x128xf32>
    %49 = arith.minimumf %25, %37 : vector<8x128xf32>
    %50 = arith.minimumf %28, %40 : vector<8x128xf32>
    %51 = arith.subf %49, %47 : vector<8x128xf32>
    %cst_9 = arith.constant 0.000000e+00 : f32
    %52 = vector.broadcast %cst_9 : f32 to vector<8x128xf32>
    %53 = arith.maximumf %51, %52 : vector<8x128xf32>
    %54 = arith.subf %50, %48 : vector<8x128xf32>
    %cst_10 = arith.constant 0.000000e+00 : f32
    %55 = vector.broadcast %cst_10 : f32 to vector<8x128xf32>
    %56 = arith.maximumf %54, %55 : vector<8x128xf32>
    %57 = arith.mulf %53, %56 : vector<8x128xf32>
    %58 = arith.addf %43, %46 : vector<8x128xf32>
    %59 = arith.subf %58, %57 : vector<8x128xf32>
    %cst_11 = arith.constant 1.000000e-16 : f32
    %60 = vector.broadcast %cst_11 : f32 to vector<8x128xf32>
    %61 = arith.addf %59, %60 : vector<8x128xf32>
    %62 = arith.divf %57, %61 : vector<8x128xf32>
    %63 = arith.mulf %62, %62 : vector<8x128xf32>
    %cst_12 = arith.constant 1.000000e+00 : f32
    %64 = vector.broadcast %cst_12 : f32 to vector<8x128xf32>
    %65 = arith.subf %64, %63 : vector<8x128xf32>
    %c0_13 = arith.constant 0 : index
    %c0_14 = arith.constant 0 : index
    %66 = vector.load %arg2[%c0_13, %c0_14] : memref<8x128xf32, #tpu.memory_space<vmem>>, vector<8x128xf32>
    tpu.vector_store %arg2[%c0_13, %c0_14], %65 {strides = array<i32>} : memref<8x128xf32, #tpu.memory_space<vmem>>, vector<8x128xf32>,
    return
  }
  func.func @transform_0(%arg0: i32) -> (i32, i32, i32) {
    %c0_i32 = arith.constant 0 : i32
    %c0_i32_0 = arith.constant 0 : i32
    %c0_i32_1 = arith.constant 0 : i32
    return %c0_i32, %arg0, %c0_i32_0 : i32, i32, i32
  }
  func.func @transform_1(%arg0: i32) -> (i32, i32) {
    %c0_i32 = arith.constant 0 : i32
    %c0_i32_0 = arith.constant 0 : i32
    return %arg0, %c0_i32 : i32, i32
  }
}

</mosaic_0001>

<llo_original>
// kernel: tpu_custom_call.1
$region0: #{tpu_custom_call.1}
  #allocation0 [shape = 'u32[]', space=smem, size = 0x4, offset = 0x4, fixed_abs, tag = 'smem constant byte address 0x4 - core index']
  #allocation1 [shape = 'u32[144,128]{1,0:T(1,128)}', space=vmem, size = 0x12000, scoped, tag = 'internal scratch']
  %s0 = inlined_call_operand.hbm [shape: f32[8,8,128], index: 0, kind: input, shape index: {}]
  %s1 = inlined_call_operand.hbm [shape: f32[8,128], index: 1, kind: output, shape index: {}]
  %s2 = sld [smem:[#allocation0]]
  $region18: #{tpu_custom_call.1} parent=0
    _
  %s4 = ssub.s32 1, %s2
  %s5 = scalar_select 0, %s4, %s2
  $region1: #{tpu_custom_call.1} parent=0
    #allocation2 [shape = 'u8[32768]{0}', space=vmem, size = 0x8000, scoped, tag = 'input window, operand 0, single buffered']
    #allocation3 [shape = 's32[1]{0}', space=sflag, size = 0x4, scoped, tag = 'scoped memory for tpu_custom_call.1']
    #allocation4 [shape = 's32[1]{0}', space=sflag, size = 0x4, scoped, tag = 'scoped memory for tpu_custom_call.1']
    #allocation5 [shape = 'u8[4096]{0}', space=vmem, size = 0x1000, scoped, tag = 'output window, operand 0, single buffered']
    %6 = vsyncpa [#allocation3], 0
    %7 = vsyncpa [#allocation4], 0
    // Predicated region
    $region2: #{tpu_custom_call.1} parent=1 // pred_check
      _
    $region3: #{tpu_custom_call.1} parent=1 // pred_check_branch
      %9 = sbr.rel (0) target = $region5
    $region4: #{tpu_custom_call.1} parent=1 // pred_region
      %s11 = ssub.s32 1024, 1024
      %12 = vsyncadd [#allocation3], %s11
      %s13 = sshll.u32 [#allocation2], 4
      %s14 = int_to_ptr.vmem [resolvable:$true] %s13
      %19 = dma.hbm_to_vmem [thread:$0]  %s0, 1024, %s14, [#allocation3], 128, 128, 8
    $region5: #{tpu_custom_call.1} parent=1 // pred_fallthru
      _
    // Predicated region
    $region6: #{tpu_custom_call.1} parent=1 // pred_check
      _
    $region7: #{tpu_custom_call.1} parent=1 // pred_check_branch
      %21 = sbr.rel (0) target = $region9
    $region8: #{tpu_custom_call.1} parent=1 // pred_region
      %22 = dma.done [#allocation3], 1024
    $region9: #{tpu_custom_call.1} parent=1 // pred_fallthru
      _
    %v23 = vld [vmem:[#allocation2] sm:$0xff]
    %v24 = vld [vmem:[#allocation2 + $0x8] sm:$0xff]
    %v25 = vld [vmem:[#allocation2 + $0x10] sm:$0xff]
    %v26 = vld [vmem:[#allocation2 + $0x18] sm:$0xff]
    %v27 = vld [vmem:[#allocation2 + $0x20] sm:$0xff]
    %v28 = vld [vmem:[#allocation2 + $0x28] sm:$0xff]
    %v29 = vld [vmem:[#allocation2 + $0x30] sm:$0xff]
    %v30 = vld [vmem:[#allocation2 + $0x38] sm:$0xff]
    %v31 = vmul.f32 %v25, 0.5
    %v32 = vsub.f32 %v23, %v31
    %v33 = vmul.f32 %v26, 0.5
    %v34 = vsub.f32 %v24, %v33
    %v35 = vadd.f32 %v23, %v31
    %v36 = vadd.f32 %v24, %v33
    %v37 = vmul.f32 %v29, 0.5
    %v38 = vsub.f32 %v27, %v37
    %v39 = vmul.f32 %v30, 0.5
    %v40 = vsub.f32 %v28, %v39
    %v41 = vadd.f32 %v27, %v37
    %v42 = vadd.f32 %v28, %v39
    %v43 = vsub.f32 %v35, %v32
    %v44 = vsub.f32 %v36, %v34
    %v45 = vmul.f32 %v43, %v44
    %v46 = vsub.f32 %v41, %v38
    %v47 = vsub.f32 %v42, %v40
    %v48 = vmul.f32 %v46, %v47
    %v49 = vmax.f32 %v32, %v38
    %v50 = vmax.f32 %v34, %v40
    %v51 = vmin.f32 %v35, %v41
    %v52 = vmin.f32 %v36, %v42
    %v53 = vsub.f32 %v51, %v49
    %v54 = vmax.f32 %v53, 0.0
    %v55 = vsub.f32 %v52, %v50
    %v56 = vmax.f32 %v55, 0.0
    %v57 = vmul.f32 %v54, %v56
    %v58 = vadd.f32 %v45, %v48
    %v59 = vsub.f32 %v58, %v57
    %v60 = vadd.f32 %v59, 1e-16
    %v61 = vrcp.pop %v60
    %v62 = vmul.f32 %v57, %v61
    %v63 = vmul.f32 %v62, %v62
    %v64 = vsub.f32 1.0, %v63
    %65 = vst [vmem:[#allocation5] sm:$0xff] %v64
    // Predicated region
    $region10: #{tpu_custom_call.1} parent=1 // pred_check
      _
    $region11: #{tpu_custom_call.1} parent=1 // pred_check_branch
      %67 = sbr.rel (0) target = $region13
    $region12: #{tpu_custom_call.1} parent=1 // pred_region
      %s69 = ssub.s32 128, 128
      %70 = vsyncadd [#allocation4], %s69
      %s72 = sshll.u32 [#allocation5], 4
      %s73 = int_to_ptr.vmem [resolvable:$true] %s72
      %75 = dma.vmem_to_hbm [thread:$0]  %s73, 128, %s1, [#allocation4]
    $region13: #{tpu_custom_call.1} parent=1 // pred_fallthru
      _
    // Predicated region
    $region14: #{tpu_custom_call.1} parent=1 // pred_check
      _
    $region15: #{tpu_custom_call.1} parent=1 // pred_check_branch
      %77 = sbr.rel (0) target = $region17
    $region16: #{tpu_custom_call.1} parent=1 // pred_region
      %78 = dma.done [#allocation4], 128
    $region17: #{tpu_custom_call.1} parent=1 // pred_fallthru
      _
    %79 = vsyncpa [#allocation3], 1
    %80 = vsyncpa [#allocation4], 1

</llo_original>
